<compile_context>
chip_gen: v7x
topology: tpu7x:2x2x1
jax: 0.10.0
libtpu: 0.0.40
codegen_flags: <defaults>
</compile_context>

<pallas_src>
import jax
import jax.numpy as jnp
import numpy as np
from jax import lax
from jax.experimental import pallas as pl
from jax.experimental.pallas import tpu as pltpu

BETA = 0.8
NEG_CLAMP = -100.0
MAX_LANES = 512          # lane-dense last dim (multiple of 128)
MAX_BLOCK_ROWS = 2048    # (2048, 512) f32 = 4 MiB per operand per block
VMEM_LIMIT_BYTES = 32 * 1024 * 1024


def _make_kernel(tr, lanes, rows_valid, inner_tiles, acc_rows, fold, ragged):
    """Build the kernel as a closure over static tiling parameters."""

    def kernel(inp_ref, tgt_ref, o_ref, acc_ref):
        c = pl.program_id(0)                 # parallel (per-core) axis
        i = pl.program_id(1)                 # sequential reduction axis

        @pl.when(i == 0)
        def _init():
            acc_ref[...] = jnp.zeros_like(acc_ref)

        p = inp_ref[...]
        t = tgt_ref[...]

        # Clamp BEFORE any multiply: max(log(0), -100) = -100, never 0 * -inf.
        x = jnp.maximum(jnp.log(p), NEG_CLAMP)          # EUP log + VPU max
        y = jnp.maximum(jnp.log(1.0 - p), NEG_CLAMP)

        ax = BETA * x
        by = (1.0 - BETA) * y
        # s = beta*t*x + (1-beta)*(1-t)*y ; global negation folded into finalize.
        s = t * (ax - by) + by

        if ragged:
            # Mask rows beyond the valid row count (Pallas pads the boundary
            # block with unspecified data; jnp.where discards any NaN/inf).
            start = (c * inner_tiles + i) * tr
            row_id = lax.broadcasted_iota(jnp.int32, s.shape, 0) + start
            s = jnp.where(row_id < rows_valid, s, 0.0)

        # Fold (tr, lanes) -> (acc_rows, lanes) with pure elementwise (VPU) adds.
        if fold > 1:
            s = jnp.sum(s.reshape(fold, acc_rows, lanes), axis=0)
        acc_ref[...] += s

        @pl.when(i == pl.num_programs(1) - 1)
        def _finalize():
            # Single cross-lane/sublane reduce + negate, once per core.
            total = -jnp.sum(acc_ref[...])
            # Lane-dense full-block store of this core's partial result.
            o_ref[...] = jnp.broadcast_to(total, o_ref.shape)

    return kernel


def balanced_ce_loss(inp, tgt):
    """Same scalar as Balanced_CE_loss()(input, target)."""
    flat_i = jnp.ravel(inp).astype(jnp.float32)
    flat_t = jnp.ravel(tgt).astype(jnp.float32)
    n = flat_i.shape[0]

    # Widest lane count that divides n -> copy-free reshape (no HBM padding).
    lanes = None
    for cand in (MAX_LANES, 256, 128):
        if n % cand == 0:
            lanes = cand
            break
    if lanes is None:
        # TODO(synk): rare fallback when numel isn't a multiple of 128; this
        # materializes a padded copy. Pad elements (input=1, target=1)
        # contribute exactly 0 loss (x=0; y=-100 multiplied by 0 coefficient).
        lanes = 128
        pad = (-n) % lanes
        flat_i = jnp.concatenate([flat_i, jnp.ones((pad,), jnp.float32)])
        flat_t = jnp.concatenate([flat_t, jnp.ones((pad,), jnp.float32)])

    rows = flat_i.shape[0] // lanes
    xi = flat_i.reshape(rows, lanes)
    xt = flat_t.reshape(rows, lanes)

    # Block rows: whole array if it fits, else large (VMEM-budgeted) tiles.
    if rows <= MAX_BLOCK_ROWS:
        tr = rows
        tiles = 1
    else:
        tr = MAX_BLOCK_ROWS
        tiles = -(-rows // tr)
    ragged = (tiles * tr != rows)

    # 2-way split of the row-tile loop across TensorCores (v7x megacore);
    # only when it divides evenly so index_maps never go out of bounds.
    nsplit = 2 if (tiles % 2 == 0 and tiles >= 2) else 1
    inner = tiles // nsplit

    # VMEM accumulator layout: fold whole sublane groups when possible.
    if tr % 8 == 0:
        acc_rows, fold = 8, tr // 8
    else:
        acc_rows, fold = tr, 1

    kernel = _make_kernel(tr, lanes, rows, inner, acc_rows, fold, ragged)

    out = pl.pallas_call(
        kernel,
        out_shape=jax.ShapeDtypeStruct((nsplit, 8, 128), jnp.float32),
        grid=(nsplit, inner),
        in_specs=[
            pl.BlockSpec((tr, lanes), lambda c, i: (c * inner + i, 0)),
            pl.BlockSpec((tr, lanes), lambda c, i: (c * inner + i, 0)),
        ],
        out_specs=pl.BlockSpec((1, 8, 128), lambda c, i: (c, 0, 0)),
        scratch_shapes=[pltpu.VMEM((acc_rows, lanes), jnp.float32)],
        compiler_params=pltpu.CompilerParams(
            dimension_semantics=("parallel", "arbitrary"),
            vmem_limit_bytes=VMEM_LIMIT_BYTES,
        ),
    )(xi, xt)

    # Sum the per-core partials (nsplit is 1 or 2).
    return jnp.sum(out[:, 0, 0])


def reference(inp, tgt):
    """Pure-JAX reference mirroring the PyTorch forward."""
    p = inp.astype(jnp.float32)
    t = tgt.astype(jnp.float32)
    x = jnp.maximum(jnp.log(p), NEG_CLAMP)
    y = jnp.maximum(jnp.log(1.0 - p), NEG_CLAMP)
    l = -(BETA * t * x + (1.0 - BETA) * (1.0 - t) * y)
    return jnp.sum(l)


if __name__ == "__main__":
    key = jax.random.PRNGKey(0)
    k1, k2 = jax.random.split(key)
    shape = (2, 4, 16, 16)  # 2048 elements = 4 lane-dense rows of 512

    # `input` is a probability map in (0, 1); `target` is a binary mask.
    inp = jax.random.uniform(k1, shape, jnp.float32, minval=0.01, maxval=0.99)
    tgt = jax.random.bernoulli(k2, 0.5, shape).astype(jnp.float32)

    loss = jax.block_until_ready(balanced_ce_loss(inp, tgt))
    loss_ref = jax.block_until_ready(reference(inp, tgt))
    np.testing.assert_allclose(np.asarray(loss), np.asarray(loss_ref),
                               rtol=1e-5, atol=1e-4)
    print("KERNEL_OK")
</pallas_src>

<mosaic_0001>
module attributes {stable_mosaic.version = 11 : i64} {
  func.func @kernel(%arg0: i32, %arg1: i32, %arg2: memref<4x512xf32, #tpu.memory_space<vmem>>, %arg3: memref<4x512xf32, #tpu.memory_space<vmem>>, %arg4: memref<1x8x128xf32, #tpu.memory_space<vmem>>, %arg5: memref<4x512xf32, #tpu.memory_space<vmem>>) attributes {dimension_semantics = [#tpu.dimension_semantics<parallel>, #tpu.dimension_semantics<arbitrary>], iteration_bounds = array<i64: 1, 1>, scalar_prefetch = 0 : i64, scratch_operands = 1 : i64, tpu.core_type = #tpu.core_type<tc>, window_params = [{transform_indices = @transform_0, window_bounds = array<i64: 4, 512>}, {transform_indices = @transform_1, window_bounds = array<i64: 4, 512>}, {transform_indices = @transform_2, window_bounds = array<i64: 1, 8, 128>}]} {
    %c0_i32 = arith.constant 0 : i32
    %0 = arith.cmpi eq, %arg1, %c0_i32 : i32
    %1 = arith.extui %0 : i1 to i32
    %c0_i32_0 = arith.constant 0 : i32
    %2 = arith.cmpi ne, %1, %c0_i32_0 : i32
    scf.if %2 {
      %cst_14 = arith.constant 0.000000e+00 : f32
      %26 = vector.broadcast %cst_14 : f32 to vector<4x512xf32>
      %c0_15 = arith.constant 0 : index
      %c0_16 = arith.constant 0 : index
      %27 = vector.load %arg5[%c0_15, %c0_16] : memref<4x512xf32, #tpu.memory_space<vmem>>, vector<4x512xf32>
      tpu.vector_store %arg5[%c0_15, %c0_16], %26 {strides = array<i32>} : memref<4x512xf32, #tpu.memory_space<vmem>>, vector<4x512xf32>,
    } else {
    }
    %c0 = arith.constant 0 : index
    %c0_1 = arith.constant 0 : index
    %3 = vector.load %arg2[%c0, %c0_1] : memref<4x512xf32, #tpu.memory_space<vmem>>, vector<4x512xf32>
    %c0_2 = arith.constant 0 : index
    %c0_3 = arith.constant 0 : index
    %4 = vector.load %arg3[%c0_2, %c0_3] : memref<4x512xf32, #tpu.memory_space<vmem>>, vector<4x512xf32>
    %5 = math.log %3 : vector<4x512xf32>
    %cst = arith.constant -1.000000e+02 : f32
    %6 = vector.broadcast %cst : f32 to vector<4x512xf32>
    %7 = arith.maximumf %5, %6 : vector<4x512xf32>
    %cst_4 = arith.constant 1.000000e+00 : f32
    %8 = vector.broadcast %cst_4 : f32 to vector<4x512xf32>
    %9 = arith.subf %8, %3 : vector<4x512xf32>
    %10 = math.log %9 : vector<4x512xf32>
    %cst_5 = arith.constant -1.000000e+02 : f32
    %11 = vector.broadcast %cst_5 : f32 to vector<4x512xf32>
    %12 = arith.maximumf %10, %11 : vector<4x512xf32>
    %cst_6 = arith.constant 8.000000e-01 : f32
    %13 = vector.broadcast %cst_6 : f32 to vector<4x512xf32>
    %14 = arith.mulf %13, %7 : vector<4x512xf32>
    %cst_7 = arith.constant 2.000000e-01 : f32
    %15 = vector.broadcast %cst_7 : f32 to vector<4x512xf32>
    %16 = arith.mulf %15, %12 : vector<4x512xf32>
    %17 = arith.subf %14, %16 : vector<4x512xf32>
    %18 = arith.mulf %4, %17 : vector<4x512xf32>
    %19 = arith.addf %18, %16 : vector<4x512xf32>
    %c0_8 = arith.constant 0 : index
    %c0_9 = arith.constant 0 : index
    %20 = vector.load %arg5[%c0_8, %c0_9] : memref<4x512xf32, #tpu.memory_space<vmem>>, vector<4x512xf32>
    %21 = arith.addf %20, %19 : vector<4x512xf32>
    %c0_10 = arith.constant 0 : index
    %c0_11 = arith.constant 0 : index
    %22 = vector.load %arg5[%c0_10, %c0_11] : memref<4x512xf32, #tpu.memory_space<vmem>>, vector<4x512xf32>
    tpu.vector_store %arg5[%c0_10, %c0_11], %21 {strides = array<i32>} : memref<4x512xf32, #tpu.memory_space<vmem>>, vector<4x512xf32>,
    %c0_i32_12 = arith.constant 0 : i32
    %23 = arith.cmpi eq, %arg1, %c0_i32_12 : i32
    %24 = arith.extui %23 : i1 to i32
    %c0_i32_13 = arith.constant 0 : i32
    %25 = arith.cmpi ne, %24, %c0_i32_13 : i32
    scf.if %25 {
      %c0_14 = arith.constant 0 : index
      %c0_15 = arith.constant 0 : index
      %26 = vector.load %arg5[%c0_14, %c0_15] : memref<4x512xf32, #tpu.memory_space<vmem>>, vector<4x512xf32>
      %27 = vector.shape_cast %26 : vector<4x512xf32> to vector<1x4x512xf32>
      %cst_16 = arith.constant dense<0.000000e+00> : vector<1xf32>
      %28 = vector.multi_reduction <add>, %27, %cst_16 [1, 2] : vector<1x4x512xf32> to vector<1xf32>
      %29 = vector.shape_cast %28 : vector<1xf32> to vector<1x1x1xf32>
      %30 = vector.extract %29[0, 0, 0] : f32 from vector<1x1x1xf32>
      %cst_17 = arith.constant 0.000000e+00 : f32
      %31 = arith.subf %cst_17, %30 : f32
      %32 = vector.broadcast %31 : f32 to vector<1x8x128xf32>
      %c0_18 = arith.constant 0 : index
      %c0_19 = arith.constant 0 : index
      %c0_20 = arith.constant 0 : index
      %33 = vector.load %arg4[%c0_18, %c0_19, %c0_20] : memref<1x8x128xf32, #tpu.memory_space<vmem>>, vector<1x8x128xf32>
      tpu.vector_store %arg4[%c0_18, %c0_19, %c0_20], %32 {strides = array<i32>} : memref<1x8x128xf32, #tpu.memory_space<vmem>>, vector<1x8x128xf32>,
    } else {
    }
    return
  }
  func.func @transform_0(%arg0: i32, %arg1: i32) -> (i32, i32) {
    %c1_i32 = arith.constant 1 : i32
    %0 = arith.muli %arg0, %c1_i32 : i32
    %1 = arith.addi %0, %arg1 : i32
    %c0_i32 = arith.constant 0 : i32
    %c0_i32_0 = arith.constant 0 : i32
    return %1, %c0_i32 : i32, i32
  }
  func.func @transform_1(%arg0: i32, %arg1: i32) -> (i32, i32) {
    %c1_i32 = arith.constant 1 : i32
    %0 = arith.muli %arg0, %c1_i32 : i32
    %1 = arith.addi %0, %arg1 : i32
    %c0_i32 = arith.constant 0 : i32
    %c0_i32_0 = arith.constant 0 : i32
    return %1, %c0_i32 : i32, i32
  }
  func.func @transform_2(%arg0: i32, %arg1: i32) -> (i32, i32, i32) {
    %c0_i32 = arith.constant 0 : i32
    %c0_i32_0 = arith.constant 0 : i32
    %c0_i32_1 = arith.constant 0 : i32
    return %arg0, %c0_i32, %c0_i32_0 : i32, i32, i32
  }
}

</mosaic_0001>

<llo_original>
// kernel: tpu_custom_call.1
$region0: #{tpu_custom_call.1}
  #allocation0 [shape = 'u32[]', space=smem, size = 0x4, offset = 0x4, fixed_abs, tag = 'smem constant byte address 0x4 - core index']
  #allocation1 [shape = 'u32[144,128]{1,0:T(1,128)}', space=vmem, size = 0x12000, scoped, tag = 'internal scratch']
  #allocation2 [shape = 'f32[4,512]{1,0:T(4,128)}', space=vmem, size = 0x2000, scoped, tag = 'scratch operand']
  %s0 = inlined_call_operand.hbm [shape: f32[4,512], index: 0, kind: input, shape index: {}]
  %s1 = inlined_call_operand.hbm [shape: f32[4,512], index: 1, kind: input, shape index: {}]
  %s2 = inlined_call_operand.hbm [shape: f32[1,8,128], index: 2, kind: output, shape index: {}]
  %s3 = sld [smem:[#allocation0]]
  $region34: #{tpu_custom_call.1} parent=0
    _
  %s5 = ssub.s32 1, %s3
  %s6 = scalar_select 0, %s5, %s3
  $region1: #{tpu_custom_call.1} parent=0
    #allocation3 [shape = 'u8[8192]{0}', space=vmem, size = 0x2000, scoped, tag = 'input window, operand 0, single buffered']
    #allocation4 [shape = 's32[1]{0}', space=sflag, size = 0x4, scoped, tag = 'scoped memory for tpu_custom_call.1']
    #allocation5 [shape = 's32[1]{0}', space=sflag, size = 0x4, scoped, tag = 'scoped memory for tpu_custom_call.1']
    #allocation6 [shape = 'u8[8192]{0}', space=vmem, size = 0x2000, scoped, tag = 'input window, operand 1, single buffered']
    #allocation7 [shape = 's32[1]{0}', space=sflag, size = 0x4, scoped, tag = 'scoped memory for tpu_custom_call.1']
    #allocation8 [shape = 'u8[4096]{0}', space=vmem, size = 0x1000, scoped, tag = 'output window, operand 0, single buffered']
    %7 = vsyncpa [#allocation4], 0
    %8 = vsyncpa [#allocation7], 0
    %9 = vsyncpa [#allocation5], 0
    // Predicated region
    $region2: #{tpu_custom_call.1} parent=1 // pred_check
      _
    $region3: #{tpu_custom_call.1} parent=1 // pred_check_branch
      %11 = sbr.rel (0) target = $region5
    $region4: #{tpu_custom_call.1} parent=1 // pred_region
      %s12 = sadd.s32 0, 0
      %s14 = ssub.s32 256, 256
      %15 = vsyncadd [#allocation4], %s14
      %s16 = smul.addr %s12, 4
      %s17 = smul.addr %s16, 64
      %s18 = scalar_lea.hbm %s0, %s17
      %s20 = sshll.u32 [#allocation3], 4
      %s21 = int_to_ptr.vmem [resolvable:$true] %s20
      %23 = dma.hbm_to_vmem [thread:$0]  %s18, 256, %s21, [#allocation4]
    $region5: #{tpu_custom_call.1} parent=1 // pred_fallthru
      _
    // Predicated region
    $region6: #{tpu_custom_call.1} parent=1 // pred_check
      _
    $region7: #{tpu_custom_call.1} parent=1 // pred_check_branch
      %25 = sbr.rel (0) target = $region9
    $region8: #{tpu_custom_call.1} parent=1 // pred_region
      %s26 = sadd.s32 0, 0
      %s28 = ssub.s32 256, 256
      %29 = vsyncadd [#allocation7], %s28
      %s30 = smul.addr %s26, 4
      %s31 = smul.addr %s30, 64
      %s32 = scalar_lea.hbm %s1, %s31
      %s34 = sshll.u32 [#allocation6], 4
      %s35 = int_to_ptr.vmem [resolvable:$true] %s34
      %37 = dma.hbm_to_vmem [thread:$0]  %s32, 256, %s35, [#allocation7]
    $region9: #{tpu_custom_call.1} parent=1 // pred_fallthru
      _
    // Predicated region
    $region10: #{tpu_custom_call.1} parent=1 // pred_check
      _
    $region11: #{tpu_custom_call.1} parent=1 // pred_check_branch
      %39 = sbr.rel (0) target = $region13
    $region12: #{tpu_custom_call.1} parent=1 // pred_region
      %40 = dma.done [#allocation4], 256
    $region13: #{tpu_custom_call.1} parent=1 // pred_fallthru
      _
    // Predicated region
    $region14: #{tpu_custom_call.1} parent=1 // pred_check
      _
    $region15: #{tpu_custom_call.1} parent=1 // pred_check_branch
      %42 = sbr.rel (0) target = $region17
    $region16: #{tpu_custom_call.1} parent=1 // pred_region
      %43 = dma.done [#allocation7], 256
    $region17: #{tpu_custom_call.1} parent=1 // pred_fallthru
      _
    %s44 = sadd.s32 0, 0
    %s45 = sadd.s32 0, 0
    %p46 = scmp.eq.s32.totalorder 0, 0
    // Predicated region
    $region18: #{tpu_custom_call.1} parent=1 // pred_check
      %p47 = pneg %p46
    $region19: #{tpu_custom_call.1} parent=1 // pred_check_branch
      %49 = sbr.rel (%p47) target = $region21
    $region20: #{tpu_custom_call.1} parent=1 // pred_region
      %50 = vst [vmem:[#allocation2] sm:$0xff] 0.0
      %51 = vst [vmem:[#allocation2 + $0x8] sm:$0xff] 0.0
    $region21: #{tpu_custom_call.1} parent=1 // pred_fallthru
      _
    %v52 = vld [vmem:[#allocation3] sm:$0xff]
    %v53 = vld [vmem:[#allocation3 + $0x8] sm:$0xff]
    %v54 = vld [vmem:[#allocation6] sm:$0xff]
    %v55 = vld [vmem:[#allocation6 + $0x8] sm:$0xff]
    %v56 = vlog2.pop %v52
    %v57 = vmul.f32 %v56, 0.6931472
    %v58 = vlog2.pop %v53
    %v59 = vmul.f32 %v58, 0.6931472
    %v60 = vmax.f32 %v57, -100.0
    %v61 = vmax.f32 %v59, -100.0
    %v62 = vsub.f32 1.0, %v52
    %v63 = vsub.f32 1.0, %v53
    %v64 = vlog2.pop %v62
    %v65 = vmul.f32 %v64, 0.6931472
    %v66 = vlog2.pop %v63
    %v67 = vmul.f32 %v66, 0.6931472
    %v68 = vmax.f32 %v65, -100.0
    %v69 = vmax.f32 %v67, -100.0
    %v70 = vmul.f32 %v60, 0.8
    %v71 = vmul.f32 %v61, 0.8
    %v72 = vmul.f32 %v68, 0.2
    %v73 = vmul.f32 %v69, 0.2
    %v74 = vsub.f32 %v70, %v72
    %v75 = vsub.f32 %v71, %v73
    %v76 = vmul.f32 %v54, %v74
    %v77 = vmul.f32 %v55, %v75
    %v78 = vadd.f32 %v76, %v72
    %v79 = vadd.f32 %v77, %v73
    %v80 = vld [vmem:[#allocation2] sm:$0xff]
    %v81 = vld [vmem:[#allocation2 + $0x8] sm:$0xff]
    %v82 = vadd.f32 %v80, %v78
    %v83 = vadd.f32 %v81, %v79
    %84 = vst [vmem:[#allocation2] sm:$0xff] %v82
    %85 = vst [vmem:[#allocation2 + $0x8] sm:$0xff] %v83
    // Predicated region
    $region22: #{tpu_custom_call.1} parent=1 // pred_check
      %p86 = pneg %p46
    $region23: #{tpu_custom_call.1} parent=1 // pred_check_branch
      %88 = sbr.rel (%p86) target = $region25
    $region24: #{tpu_custom_call.1} parent=1 // pred_region
      %v89 = vld [vmem:[#allocation2] sm:$0xff]
      %v90 = vld [vmem:[#allocation2 + $0x8] sm:$0xff]
      %v93 = vcombine.high %v89, %v89
      %v94 = vcombine.high %v90, %v90
      %vm97 = vcmask 1043456
      %v98 = vsel %vm97, %v89, 0.0
      %v99 = vsel %vm97, %v93, 0.0
      %v100 = vadd.f32 %v98, %v99
      %v101 = vsel %vm97, %v90, 0.0
      %v102 = vadd.f32 %v100, %v101
      %v103 = vsel %vm97, %v94, 0.0
      %v104 = vadd.f32 %v102, %v103
      %105 = vadd.xlane.f32.xlu0 %v104
      %v106 = vpop.xlane.xlu0 %105
      %v107 = vrot.slane %v106, 4
      %v108 = vadd.f32 %v106, %v107
      %v109 = vrot.slane %v108, 2
      %v110 = vadd.f32 %v108, %v109
      %v111 = vrot.slane %v110, 1
      %v112 = vadd.f32 %v110, %v111
      %s113 = vtos %v112
      %s114 = ssub.f32 0.0, %s113
      %v115 = vstv %s114
      %116 = vst [vmem:[#allocation8] sm:$0xff] %v115
    $region25: #{tpu_custom_call.1} parent=1 // pred_fallthru
      _
    // Predicated region
    $region26: #{tpu_custom_call.1} parent=1 // pred_check
      _
    $region27: #{tpu_custom_call.1} parent=1 // pred_check_branch
      %118 = sbr.rel (0) target = $region29
    $region28: #{tpu_custom_call.1} parent=1 // pred_region
      %s120 = ssub.s32 128, 128
      %121 = vsyncadd [#allocation5], %s120
      %s123 = sshll.u32 [#allocation8], 4
      %s124 = int_to_ptr.vmem [resolvable:$true] %s123
      %126 = dma.vmem_to_hbm [thread:$0]  %s124, 128, %s2, [#allocation5]
    $region29: #{tpu_custom_call.1} parent=1 // pred_fallthru
      _
    // Predicated region
    $region30: #{tpu_custom_call.1} parent=1 // pred_check
      _
    $region31: #{tpu_custom_call.1} parent=1 // pred_check_branch
      %128 = sbr.rel (0) target = $region33
    $region32: #{tpu_custom_call.1} parent=1 // pred_region
      %129 = dma.done [#allocation5], 128
    $region33: #{tpu_custom_call.1} parent=1 // pred_fallthru
      _
    %130 = vsyncpa [#allocation4], 1
    %131 = vsyncpa [#allocation7], 1
    %132 = vsyncpa [#allocation5], 1

</llo_original>
